<compile_context>
chip_gen: v5e
topology: v5e:2x2
jax: 0.10.0
libtpu: 0.0.40
codegen_flags: <defaults>
</compile_context>

<pallas_src>
import functools
import math

import jax
import jax.numpy as jnp
from jax.experimental import pallas as pl
from jax.experimental.pallas import tpu as pltpu

_LN_EPS = 1e-6      # Normalization(): nn.LayerNorm(dim, eps=1e-06)


def _round_up(x, m):
    return ((x + m - 1) // m) * m


def _cdiv(a, b):
    return (a + b - 1) // b


def _apply_activation(y, act):
    if act == 'gelu':                      # nn.GELU(approximate='tanh')
        c = math.sqrt(2.0 / math.pi)
        return 0.5 * y * (1.0 + jnp.tanh(c * (y + 0.044715 * y * y * y)))
    if act == 'relu':
        return jnp.maximum(y, 0.0)
    if act == 'elu':
        return jnp.where(y > 0.0, y, jnp.exp(y) - 1.0)
    if act == 'leaky_relu':
        return jnp.where(y > 0.0, y, 0.01 * y)
    if act == 'mish':
        return y * jnp.tanh(jnp.log1p(jnp.exp(y)))
    return y                               # activation == None


def _fused_mlp_kernel(*refs, layer_cfgs, has_cat, compute_dtype):
    """Whole MLP fused in one kernel.

    refs layout:
      [x, (cat)?, per-layer {w_x, (w_cat)?, b, (gamma, beta if LayerNorm)?}, out]
    Matmuls run on the MXU (bf16 in, f32 accumulate); LayerNorm / activation
    run in f32 on the VPU/EUP on the same VMEM-resident tile.
    """
    o_ref = refs[-1]
    x = refs[0][...].astype(compute_dtype)                 # (TB, d_in)
    idx = 1
    if has_cat:
        cat = refs[idx][...].astype(compute_dtype)         # (TB, d_cat)
        idx += 1

    n_layers = len(layer_cfgs)
    for li, (use_ln, act) in enumerate(layer_cfgs):
        w_x = refs[idx][...]
        idx += 1
        if has_cat:
            w_c = refs[idx][...]
            idx += 1
        b = refs[idx][...].astype(jnp.float32)             # (1, d)
        idx += 1

        # Split-weight matmul replaces torch.cat((x, cat), -1) @ W.
        y = jnp.dot(x, w_x, preferred_element_type=jnp.float32)
        if has_cat:
            y = y + jnp.dot(cat, w_c, preferred_element_type=jnp.float32)
        y = y + b

        if use_ln:                                         # nn.LayerNorm(eps=1e-6)
            gamma = refs[idx][...].astype(jnp.float32)
            beta = refs[idx + 1][...].astype(jnp.float32)
            idx += 2
            n = y.shape[-1]
            inv_n = 1.0 / n
            mean = jnp.sum(y, axis=-1, keepdims=True) * inv_n
            d = y - mean
            # Two-pass variance: no catastrophic cancellation (VPU has slack).
            var = jnp.sum(d * d, axis=-1, keepdims=True) * inv_n
            scale = gamma * jax.lax.rsqrt(var + _LN_EPS)
            y = d * scale + beta

        y = _apply_activation(y, act)
        # TODO(synk): dropout is identity in eval mode; training-mode dropout
        # would use pltpu.prng_seed + pltpu.prng_random_bits with inverted scaling.

        if li == n_layers - 1:
            o_ref[...] = y.astype(o_ref.dtype)             # (TB, d_out), no lane padding
        else:
            x = y.astype(compute_dtype)                    # bf16 for next MXU pass


class MLPPallas:
    """JAX/Pallas port of scproca MLP (eval mode), fully fused forward."""

    def __init__(self, key, d_in, d_out, d_hids, d_cat,
                 norm_hid='LayerNorm', activation_hid='gelu',
                 norm_out=None, activation_out=None,
                 compute_dtype=jnp.bfloat16, output_dtype=jnp.float32):
        if isinstance(d_hids, int):
            d_hids = (d_hids,)
        d_hids = tuple(d_hids) if d_hids is not None else ()
        # TODO(synk): 'BatchNorm' option of Normalization() (running stats) not ported.
        assert norm_hid in (None, 'LayerNorm') and norm_out in (None, 'LayerNorm')

        self.d_in = d_in
        self.d_out = d_out
        self.d_cat = d_cat
        self.has_cat = d_cat is not None and d_cat > 0
        self.compute_dtype = compute_dtype
        self.output_dtype = output_dtype    # f32 to match torch reference;
                                            # set bf16 if downstream tolerates it.

        self.layer_params = []   # per layer: (w_x, [w_cat,] b, [gamma, beta])  all 2-D
        self.layer_cfgs = []     # per layer: (use_ln, activation)

        dims = list(d_hids) + [d_out]
        input_dim = d_in
        for li, hidden_dim in enumerate(dims):
            is_last = (li == len(dims) - 1)
            fan_in = input_dim + (d_cat if self.has_cat else 0)
            bound = 1.0 / math.sqrt(fan_in)                # nn.Linear default-ish init
            key, kw, kb = jax.random.split(key, 3)
            w = jax.random.uniform(kw, (fan_in, hidden_dim), jnp.float32, -bound, bound)
            b = jax.random.uniform(kb, (hidden_dim,), jnp.float32, -bound, bound)
            use_ln = (norm_out == 'LayerNorm') if is_last else (norm_hid == 'LayerNorm')
            act = activation_out if is_last else activation_hid

            params = []
            if self.has_cat:
                params.append(w[:input_dim].astype(compute_dtype))
                params.append(w[input_dim:].astype(compute_dtype))
            else:
                params.append(w.astype(compute_dtype))
            params.append(b.reshape(1, -1))                # keep bias/LN params in f32
            if use_ln:
                params.append(jnp.ones((1, hidden_dim), jnp.float32))
                params.append(jnp.zeros((1, hidden_dim), jnp.float32))
            self.layer_params.append(tuple(params))
            self.layer_cfgs.append((use_ln, act))
            input_dim = hidden_dim

    @staticmethod
    def _choose_batch_tile(batch, cap=4096):
        """Pick a batch tile: big enough to amortize ~0.35us/grid-step overhead,
        aligned to 8 sublanes, minimal padding, and >=2 blocks when there is
        enough work to feed both v7x TensorCores."""
        n_blk = max(1, _cdiv(batch, cap))
        if batch >= 2048:
            n_blk = max(n_blk, 2)
        return _round_up(_cdiv(batch, n_blk), 8)

    def __call__(self, x, cat=None):
        assert (cat is not None) == self.has_cat
        batch = x.shape[0]

        tb = self._choose_batch_tile(batch)
        grid = _cdiv(batch, tb)   # ragged last block handled by Pallas (no jnp.pad copy)

        x = x.astype(self.compute_dtype)
        if self.has_cat:
            cat = cat.astype(self.compute_dtype)

        args = [x]
        in_specs = [pl.BlockSpec((tb, self.d_in), lambda i: (i, 0))]
        if self.has_cat:
            args.append(cat)
            in_specs.append(pl.BlockSpec((tb, self.d_cat), lambda i: (i, 0)))
        for params in self.layer_params:
            for p in params:
                args.append(p)
                # Constant index_map -> tiny params stay VMEM-resident, no re-DMA
                # across grid steps (double-buffer copies of <10 KB are negligible).
                in_specs.append(pl.BlockSpec(p.shape, lambda i: (0, 0)))

        kernel = functools.partial(
            _fused_mlp_kernel,
            layer_cfgs=tuple(self.layer_cfgs),
            has_cat=self.has_cat,
            compute_dtype=self.compute_dtype,
        )

        out = pl.pallas_call(
            kernel,
            out_shape=jax.ShapeDtypeStruct((batch, self.d_out), self.output_dtype),
            grid_spec=pltpu.PrefetchScalarGridSpec(
                num_scalar_prefetch=0,
                grid=(grid,),
                in_specs=in_specs,
                # (tb, d_out): tb % 8 == 0 and d_out equals the full last dim -> legal.
                out_specs=pl.BlockSpec((tb, self.d_out), lambda i: (i, 0)),
            ),
            compiler_params=pltpu.CompilerParams(
                dimension_semantics=("parallel",),   # shards batch over v7x's 2 TCs
                # Raise over v5e's 16 MiB default; at tb=4096 the lane-padded,
                # double-buffered blocks + f32 intermediates are well under this
                # and leave headroom on v7x (64 MiB physical VMEM).
                vmem_limit_bytes=32 * 1024 * 1024,
            ),
        )(*args)

        return out


def _reference_forward(model, x, cat):
    """Pure-JAX f32 reference using the same (bf16-stored) parameters."""
    h = x.astype(model.compute_dtype).astype(jnp.float32)
    c = cat.astype(model.compute_dtype).astype(jnp.float32) if cat is not None else None
    for params, (use_ln, act) in zip(model.layer_params, model.layer_cfgs):
        idx = 0
        w_x = params[idx].astype(jnp.float32); idx += 1
        if model.has_cat:
            w_c = params[idx].astype(jnp.float32); idx += 1
        b = params[idx].astype(jnp.float32); idx += 1
        y = h @ w_x + b
        if model.has_cat:
            y = y + c @ w_c
        if use_ln:
            gamma = params[idx].astype(jnp.float32)
            beta = params[idx + 1].astype(jnp.float32)
            mean = jnp.mean(y, axis=-1, keepdims=True)
            var = jnp.mean((y - mean) ** 2, axis=-1, keepdims=True)
            y = (y - mean) * jax.lax.rsqrt(var + _LN_EPS) * gamma + beta
        y = _apply_activation(y, act)
        h = y
    return h


if __name__ == "__main__":
    key = jax.random.PRNGKey(0)
    k_params, k_x, k_cat = jax.random.split(key, 3)

    batch, d_in, d_cat, d_out = 8, 16, 4, 8
    d_hids = (32, 32)

    model = MLPPallas(k_params, d_in=d_in, d_out=d_out, d_hids=d_hids,
                      d_cat=d_cat, norm_hid='LayerNorm', activation_hid='gelu',
                      norm_out=None, activation_out=None)

    x = jax.random.normal(k_x, (batch, d_in), jnp.float32)
    cat = jax.random.normal(k_cat, (batch, d_cat), jnp.float32)

    out = jax.block_until_ready(model(x, cat))
    assert out.shape == (batch, d_out), out.shape
    assert bool(jnp.all(jnp.isfinite(out)))

    ref = _reference_forward(model, x, cat)
    max_err = float(jnp.max(jnp.abs(out.astype(jnp.float32) - ref)))
    assert max_err < 5e-2, f"max abs error vs reference: {max_err}"

    print("KERNEL_OK")
</pallas_src>

<mosaic_0001>
module attributes {stable_mosaic.version = 11 : i64} {
  func.func @_fused_mlp_kernel(%arg0: i32, %arg1: memref<8x16xbf16, #tpu.memory_space<vmem>>, %arg2: memref<8x4xbf16, #tpu.memory_space<vmem>>, %arg3: memref<16x32xbf16, #tpu.memory_space<vmem>>, %arg4: memref<4x32xbf16, #tpu.memory_space<vmem>>, %arg5: memref<1x32xf32, #tpu.memory_space<vmem>>, %arg6: memref<1x32xf32, #tpu.memory_space<vmem>>, %arg7: memref<1x32xf32, #tpu.memory_space<vmem>>, %arg8: memref<32x32xbf16, #tpu.memory_space<vmem>>, %arg9: memref<4x32xbf16, #tpu.memory_space<vmem>>, %arg10: memref<1x32xf32, #tpu.memory_space<vmem>>, %arg11: memref<1x32xf32, #tpu.memory_space<vmem>>, %arg12: memref<1x32xf32, #tpu.memory_space<vmem>>, %arg13: memref<32x8xbf16, #tpu.memory_space<vmem>>, %arg14: memref<4x8xbf16, #tpu.memory_space<vmem>>, %arg15: memref<1x8xf32, #tpu.memory_space<vmem>>, %arg16: memref<8x8xf32, #tpu.memory_space<vmem>>) attributes {dimension_semantics = [#tpu.dimension_semantics<parallel>], iteration_bounds = array<i64: 1>, scalar_prefetch = 0 : i64, scratch_operands = 0 : i64, tpu.core_type = #tpu.core_type<tc>, window_params = [{transform_indices = @transform_0, window_bounds = array<i64: 8, 16>}, {transform_indices = @transform_1, window_bounds = array<i64: 8, 4>}, {pipeline_mode = #tpu.pipeline_mode<synchronous>, transform_indices = @transform_2, window_bounds = array<i64: 16, 32>}, {pipeline_mode = #tpu.pipeline_mode<synchronous>, transform_indices = @transform_3, window_bounds = array<i64: 4, 32>}, {pipeline_mode = #tpu.pipeline_mode<synchronous>, transform_indices = @transform_4, window_bounds = array<i64: 1, 32>}, {pipeline_mode = #tpu.pipeline_mode<synchronous>, transform_indices = @transform_5, window_bounds = array<i64: 1, 32>}, {pipeline_mode = #tpu.pipeline_mode<synchronous>, transform_indices = @transform_6, window_bounds = array<i64: 1, 32>}, {pipeline_mode = #tpu.pipeline_mode<synchronous>, transform_indices = @transform_7, window_bounds = array<i64: 32, 32>}, {pipeline_mode = #tpu.pipeline_mode<synchronous>, transform_indices = @transform_8, window_bounds = array<i64: 4, 32>}, {pipeline_mode = #tpu.pipeline_mode<synchronous>, transform_indices = @transform_9, window_bounds = array<i64: 1, 32>}, {pipeline_mode = #tpu.pipeline_mode<synchronous>, transform_indices = @transform_10, window_bounds = array<i64: 1, 32>}, {pipeline_mode = #tpu.pipeline_mode<synchronous>, transform_indices = @transform_11, window_bounds = array<i64: 1, 32>}, {pipeline_mode = #tpu.pipeline_mode<synchronous>, transform_indices = @transform_12, window_bounds = array<i64: 32, 8>}, {pipeline_mode = #tpu.pipeline_mode<synchronous>, transform_indices = @transform_13, window_bounds = array<i64: 4, 8>}, {pipeline_mode = #tpu.pipeline_mode<synchronous>, transform_indices = @transform_14, window_bounds = array<i64: 1, 8>}, {transform_indices = @transform_15, window_bounds = array<i64: 8, 8>}]} {
    %c0 = arith.constant 0 : index
    %c0_0 = arith.constant 0 : index
    %0 = vector.load %arg1[%c0, %c0_0] : memref<8x16xbf16, #tpu.memory_space<vmem>>, vector<8x16xbf16>
    %c0_1 = arith.constant 0 : index
    %c0_2 = arith.constant 0 : index
    %1 = vector.load %arg2[%c0_1, %c0_2] : memref<8x4xbf16, #tpu.memory_space<vmem>>, vector<8x4xbf16>
    %c0_3 = arith.constant 0 : index
    %c0_4 = arith.constant 0 : index
    %2 = vector.load %arg3[%c0_3, %c0_4] : memref<16x32xbf16, #tpu.memory_space<vmem>>, vector<16x32xbf16>
    %c0_5 = arith.constant 0 : index
    %c0_6 = arith.constant 0 : index
    %3 = vector.load %arg4[%c0_5, %c0_6] : memref<4x32xbf16, #tpu.memory_space<vmem>>, vector<4x32xbf16>
    %c0_7 = arith.constant 0 : index
    %c0_8 = arith.constant 0 : index
    %4 = vector.load %arg5[%c0_7, %c0_8] : memref<1x32xf32, #tpu.memory_space<vmem>>, vector<1x32xf32>
    %cst = arith.constant dense<0.000000e+00> : vector<8x32xf32>
    %5 = tpu.matmul %0, %2, %cst {dimension_numbers = #tpu.dot_dimension_numbers<[1], [0], [0], [1], [0, 0, 1, 1], [], []>} : vector<8x16xbf16>, vector<16x32xbf16>, vector<8x32xf32> -> vector<8x32xf32>
    %cst_9 = arith.constant dense<0.000000e+00> : vector<8x32xf32>
    %6 = tpu.matmul %1, %3, %cst_9 {dimension_numbers = #tpu.dot_dimension_numbers<[1], [0], [0], [1], [0, 0, 1, 1], [], []>} : vector<8x4xbf16>, vector<4x32xbf16>, vector<8x32xf32> -> vector<8x32xf32>
    %7 = arith.addf %5, %6 : vector<8x32xf32>
    %8 = vector.broadcast %4 : vector<1x32xf32> to vector<8x32xf32>
    %9 = arith.addf %7, %8 : vector<8x32xf32>
    %c0_10 = arith.constant 0 : index
    %c0_11 = arith.constant 0 : index
    %10 = vector.load %arg6[%c0_10, %c0_11] : memref<1x32xf32, #tpu.memory_space<vmem>>, vector<1x32xf32>
    %c0_12 = arith.constant 0 : index
    %c0_13 = arith.constant 0 : index
    %11 = vector.load %arg7[%c0_12, %c0_13] : memref<1x32xf32, #tpu.memory_space<vmem>>, vector<1x32xf32>
    %cst_14 = arith.constant dense<0.000000e+00> : vector<8xf32>
    %12 = vector.multi_reduction <add>, %9, %cst_14 [1] : vector<8x32xf32> to vector<8xf32>
    %13 = vector.shape_cast %12 : vector<8xf32> to vector<8x1xf32>
    %cst_15 = arith.constant 3.125000e-02 : f32
    %14 = vector.broadcast %cst_15 : f32 to vector<8x1xf32>
    %15 = arith.mulf %13, %14 : vector<8x1xf32>
    %16 = vector.broadcast %15 : vector<8x1xf32> to vector<8x32xf32>
    %17 = arith.subf %9, %16 : vector<8x32xf32>
    %18 = arith.mulf %17, %17 : vector<8x32xf32>
    %cst_16 = arith.constant dense<0.000000e+00> : vector<8xf32>
    %19 = vector.multi_reduction <add>, %18, %cst_16 [1] : vector<8x32xf32> to vector<8xf32>
    %20 = vector.shape_cast %19 : vector<8xf32> to vector<8x1xf32>
    %cst_17 = arith.constant 3.125000e-02 : f32
    %21 = vector.broadcast %cst_17 : f32 to vector<8x1xf32>
    %22 = arith.mulf %20, %21 : vector<8x1xf32>
    %cst_18 = arith.constant 9.99999997E-7 : f32
    %23 = vector.broadcast %cst_18 : f32 to vector<8x1xf32>
    %24 = arith.addf %22, %23 : vector<8x1xf32>
    %25 = math.rsqrt %24 : vector<8x1xf32>
    %26 = vector.broadcast %10 : vector<1x32xf32> to vector<8x32xf32>
    %27 = vector.broadcast %25 : vector<8x1xf32> to vector<8x32xf32>
    %28 = arith.mulf %26, %27 : vector<8x32xf32>
    %29 = arith.mulf %17, %28 : vector<8x32xf32>
    %30 = vector.broadcast %11 : vector<1x32xf32> to vector<8x32xf32>
    %31 = arith.addf %29, %30 : vector<8x32xf32>
    %cst_19 = arith.constant 5.000000e-01 : f32
    %32 = vector.broadcast %cst_19 : f32 to vector<8x32xf32>
    %33 = arith.mulf %32, %31 : vector<8x32xf32>
    %cst_20 = arith.constant 4.471500e-02 : f32
    %34 = vector.broadcast %cst_20 : f32 to vector<8x32xf32>
    %35 = arith.mulf %34, %31 : vector<8x32xf32>
    %36 = arith.mulf %35, %31 : vector<8x32xf32>
    %37 = arith.mulf %36, %31 : vector<8x32xf32>
    %38 = arith.addf %31, %37 : vector<8x32xf32>
    %cst_21 = arith.constant 0.797884583 : f32
    %39 = vector.broadcast %cst_21 : f32 to vector<8x32xf32>
    %40 = arith.mulf %39, %38 : vector<8x32xf32>
    %41 = math.tanh %40 : vector<8x32xf32>
    %cst_22 = arith.constant 1.000000e+00 : f32
    %42 = vector.broadcast %cst_22 : f32 to vector<8x32xf32>
    %43 = arith.addf %42, %41 : vector<8x32xf32>
    %44 = arith.mulf %33, %43 : vector<8x32xf32>
    %45 = arith.truncf %44 : vector<8x32xf32> to vector<8x32xbf16>
    %c0_23 = arith.constant 0 : index
    %c0_24 = arith.constant 0 : index
    %46 = vector.load %arg8[%c0_23, %c0_24] : memref<32x32xbf16, #tpu.memory_space<vmem>>, vector<32x32xbf16>
    %c0_25 = arith.constant 0 : index
    %c0_26 = arith.constant 0 : index
    %47 = vector.load %arg9[%c0_25, %c0_26] : memref<4x32xbf16, #tpu.memory_space<vmem>>, vector<4x32xbf16>
    %c0_27 = arith.constant 0 : index
    %c0_28 = arith.constant 0 : index
    %48 = vector.load %arg10[%c0_27, %c0_28] : memref<1x32xf32, #tpu.memory_space<vmem>>, vector<1x32xf32>
    %cst_29 = arith.constant dense<0.000000e+00> : vector<8x32xf32>
    %49 = tpu.matmul %45, %46, %cst_29 {dimension_numbers = #tpu.dot_dimension_numbers<[1], [0], [0], [1], [0, 0, 1, 1], [], []>} : vector<8x32xbf16>, vector<32x32xbf16>, vector<8x32xf32> -> vector<8x32xf32>
    %cst_30 = arith.constant dense<0.000000e+00> : vector<8x32xf32>
    %50 = tpu.matmul %1, %47, %cst_30 {dimension_numbers = #tpu.dot_dimension_numbers<[1], [0], [0], [1], [0, 0, 1, 1], [], []>} : vector<8x4xbf16>, vector<4x32xbf16>, vector<8x32xf32> -> vector<8x32xf32>
    %51 = arith.addf %49, %50 : vector<8x32xf32>
    %52 = vector.broadcast %48 : vector<1x32xf32> to vector<8x32xf32>
    %53 = arith.addf %51, %52 : vector<8x32xf32>
    %c0_31 = arith.constant 0 : index
    %c0_32 = arith.constant 0 : index
    %54 = vector.load %arg11[%c0_31, %c0_32] : memref<1x32xf32, #tpu.memory_space<vmem>>, vector<1x32xf32>
    %c0_33 = arith.constant 0 : index
    %c0_34 = arith.constant 0 : index
    %55 = vector.load %arg12[%c0_33, %c0_34] : memref<1x32xf32, #tpu.memory_space<vmem>>, vector<1x32xf32>
    %cst_35 = arith.constant dense<0.000000e+00> : vector<8xf32>
    %56 = vector.multi_reduction <add>, %53, %cst_35 [1] : vector<8x32xf32> to vector<8xf32>
    %57 = vector.shape_cast %56 : vector<8xf32> to vector<8x1xf32>
    %cst_36 = arith.constant 3.125000e-02 : f32
    %58 = vector.broadcast %cst_36 : f32 to vector<8x1xf32>
    %59 = arith.mulf %57, %58 : vector<8x1xf32>
    %60 = vector.broadcast %59 : vector<8x1xf32> to vector<8x32xf32>
    %61 = arith.subf %53, %60 : vector<8x32xf32>
    %62 = arith.mulf %61, %61 : vector<8x32xf32>
    %cst_37 = arith.constant dense<0.000000e+00> : vector<8xf32>
    %63 = vector.multi_reduction <add>, %62, %cst_37 [1] : vector<8x32xf32> to vector<8xf32>
    %64 = vector.shape_cast %63 : vector<8xf32> to vector<8x1xf32>
    %cst_38 = arith.constant 3.125000e-02 : f32
    %65 = vector.broadcast %cst_38 : f32 to vector<8x1xf32>
    %66 = arith.mulf %64, %65 : vector<8x1xf32>
    %cst_39 = arith.constant 9.99999997E-7 : f32
    %67 = vector.broadcast %cst_39 : f32 to vector<8x1xf32>
    %68 = arith.addf %66, %67 : vector<8x1xf32>
    %69 = math.rsqrt %68 : vector<8x1xf32>
    %70 = vector.broadcast %54 : vector<1x32xf32> to vector<8x32xf32>
    %71 = vector.broadcast %69 : vector<8x1xf32> to vector<8x32xf32>
    %72 = arith.mulf %70, %71 : vector<8x32xf32>
    %73 = arith.mulf %61, %72 : vector<8x32xf32>
    %74 = vector.broadcast %55 : vector<1x32xf32> to vector<8x32xf32>
    %75 = arith.addf %73, %74 : vector<8x32xf32>
    %cst_40 = arith.constant 5.000000e-01 : f32
    %76 = vector.broadcast %cst_40 : f32 to vector<8x32xf32>
    %77 = arith.mulf %76, %75 : vector<8x32xf32>
    %cst_41 = arith.constant 4.471500e-02 : f32
    %78 = vector.broadcast %cst_41 : f32 to vector<8x32xf32>
    %79 = arith.mulf %78, %75 : vector<8x32xf32>
    %80 = arith.mulf %79, %75 : vector<8x32xf32>
    %81 = arith.mulf %80, %75 : vector<8x32xf32>
    %82 = arith.addf %75, %81 : vector<8x32xf32>
    %cst_42 = arith.constant 0.797884583 : f32
    %83 = vector.broadcast %cst_42 : f32 to vector<8x32xf32>
    %84 = arith.mulf %83, %82 : vector<8x32xf32>
    %85 = math.tanh %84 : vector<8x32xf32>
    %cst_43 = arith.constant 1.000000e+00 : f32
    %86 = vector.broadcast %cst_43 : f32 to vector<8x32xf32>
    %87 = arith.addf %86, %85 : vector<8x32xf32>
    %88 = arith.mulf %77, %87 : vector<8x32xf32>
    %89 = arith.truncf %88 : vector<8x32xf32> to vector<8x32xbf16>
    %c0_44 = arith.constant 0 : index
    %c0_45 = arith.constant 0 : index
    %90 = vector.load %arg13[%c0_44, %c0_45] : memref<32x8xbf16, #tpu.memory_space<vmem>>, vector<32x8xbf16>
    %c0_46 = arith.constant 0 : index
    %c0_47 = arith.constant 0 : index
    %91 = vector.load %arg14[%c0_46, %c0_47] : memref<4x8xbf16, #tpu.memory_space<vmem>>, vector<4x8xbf16>
    %c0_48 = arith.constant 0 : index
    %c0_49 = arith.constant 0 : index
    %92 = vector.load %arg15[%c0_48, %c0_49] : memref<1x8xf32, #tpu.memory_space<vmem>>, vector<1x8xf32>
    %cst_50 = arith.constant dense<0.000000e+00> : vector<8x8xf32>
    %93 = tpu.matmul %89, %90, %cst_50 {dimension_numbers = #tpu.dot_dimension_numbers<[1], [0], [0], [1], [0, 0, 1, 1], [], []>} : vector<8x32xbf16>, vector<32x8xbf16>, vector<8x8xf32> -> vector<8x8xf32>
    %cst_51 = arith.constant dense<0.000000e+00> : vector<8x8xf32>
    %94 = tpu.matmul %1, %91, %cst_51 {dimension_numbers = #tpu.dot_dimension_numbers<[1], [0], [0], [1], [0, 0, 1, 1], [], []>} : vector<8x4xbf16>, vector<4x8xbf16>, vector<8x8xf32> -> vector<8x8xf32>
    %95 = arith.addf %93, %94 : vector<8x8xf32>
    %96 = vector.broadcast %92 : vector<1x8xf32> to vector<8x8xf32>
    %97 = arith.addf %95, %96 : vector<8x8xf32>
    %c0_52 = arith.constant 0 : index
    %c0_53 = arith.constant 0 : index
    %98 = vector.load %arg16[%c0_52, %c0_53] : memref<8x8xf32, #tpu.memory_space<vmem>>, vector<8x8xf32>
    tpu.vector_store %arg16[%c0_52, %c0_53], %97 {strides = array<i32>} : memref<8x8xf32, #tpu.memory_space<vmem>>, vector<8x8xf32>,
    return
  }
  func.func @transform_0(%arg0: i32) -> (i32, i32) {
    %c0_i32 = arith.constant 0 : i32
    %c0_i32_0 = arith.constant 0 : i32
    return %arg0, %c0_i32 : i32, i32
  }
  func.func @transform_1(%arg0: i32) -> (i32, i32) {
    %c0_i32 = arith.constant 0 : i32
    %c0_i32_0 = arith.constant 0 : i32
    return %arg0, %c0_i32 : i32, i32
  }
  func.func @transform_2(%arg0: i32) -> (i32, i32) {
    %c0_i32 = arith.constant 0 : i32
    %c0_i32_0 = arith.constant 0 : i32
    %c0_i32_1 = arith.constant 0 : i32
    return %c0_i32, %c0_i32_0 : i32, i32
  }
  func.func @transform_3(%arg0: i32) -> (i32, i32) {
    %c0_i32 = arith.constant 0 : i32
    %c0_i32_0 = arith.constant 0 : i32
    %c0_i32_1 = arith.constant 0 : i32
    return %c0_i32, %c0_i32_0 : i32, i32
  }
  func.func @transform_4(%arg0: i32) -> (i32, i32) {
    %c0_i32 = arith.constant 0 : i32
    %c0_i32_0 = arith.constant 0 : i32
    %c0_i32_1 = arith.constant 0 : i32
    return %c0_i32, %c0_i32_0 : i32, i32
  }
  func.func @transform_5(%arg0: i32) -> (i32, i32) {
    %c0_i32 = arith.constant 0 : i32
    %c0_i32_0 = arith.constant 0 : i32
    %c0_i32_1 = arith.constant 0 : i32
    return %c0_i32, %c0_i32_0 : i32, i32
  }
  func.func @transform_6(%arg0: i32) -> (i32, i32) {
    %c0_i32 = arith.constant 0 : i32
    %c0_i32_0 = arith.constant 0 : i32
    %c0_i32_1 = arith.constant 0 : i32
    return %c0_i32, %c0_i32_0 : i32, i32
  }
  func.func @transform_7(%arg0: i32) -> (i32, i32) {
    %c0_i32 = arith.constant 0 : i32
    %c0_i32_0 = arith.constant 0 : i32
    %c0_i32_1 = arith.constant 0 : i32
    return %c0_i32, %c0_i32_0 : i32, i32
  }
  func.func @transform_8(%arg0: i32) -> (i32, i32) {
    %c0_i32 = arith.constant 0 : i32
    %c0_i32_0 = arith.constant 0 : i32
    %c0_i32_1 = arith.constant 0 : i32
    return %c0_i32, %c0_i32_0 : i32, i32
  }
  func.func @transform_9(%arg0: i32) -> (i32, i32) {
    %c0_i32 = arith.constant 0 : i32
    %c0_i32_0 = arith.constant 0 : i32
    %c0_i32_1 = arith.constant 0 : i32
    return %c0_i32, %c0_i32_0 : i32, i32
  }
  func.func @transform_10(%arg0: i32) -> (i32, i32) {
    %c0_i32 = arith.constant 0 : i32
    %c0_i32_0 = arith.constant 0 : i32
    %c0_i32_1 = arith.constant 0 : i32
    return %c0_i32, %c0_i32_0 : i32, i32
  }
  func.func @transform_11(%arg0: i32) -> (i32, i32) {
    %c0_i32 = arith.constant 0 : i32
    %c0_i32_0 = arith.constant 0 : i32
    %c0_i32_1 = arith.constant 0 : i32
    return %c0_i32, %c0_i32_0 : i32, i32
  }
  func.func @transform_12(%arg0: i32) -> (i32, i32) {
    %c0_i32 = arith.constant 0 : i32
    %c0_i32_0 = arith.constant 0 : i32
    %c0_i32_1 = arith.constant 0 : i32
    return %c0_i32, %c0_i32_0 : i32, i32
  }
  func.func @transform_13(%arg0: i32) -> (i32, i32) {
    %c0_i32 = arith.constant 0 : i32
    %c0_i32_0 = arith.constant 0 : i32
    %c0_i32_1 = arith.constant 0 : i32
    return %c0_i32, %c0_i32_0 : i32, i32
  }
  func.func @transform_14(%arg0: i32) -> (i32, i32) {
    %c0_i32 = arith.constant 0 : i32
    %c0_i32_0 = arith.constant 0 : i32
    %c0_i32_1 = arith.constant 0 : i32
    return %c0_i32, %c0_i32_0 : i32, i32
  }
  func.func @transform_15(%arg0: i32) -> (i32, i32) {
    %c0_i32 = arith.constant 0 : i32
    %c0_i32_0 = arith.constant 0 : i32
    return %arg0, %c0_i32 : i32, i32
  }
}

</mosaic_0001>

<llo_original>
// kernel: tpu_custom_call.1
$region0: #{tpu_custom_call.1}
  #allocation0 [shape = 'u32[]', space=smem, size = 0x4, offset = 0x4, fixed_abs, tag = 'smem constant byte address 0x4 - core index']
  #allocation1 [shape = 'u32[72,128]{1,0:T(1,128)}', space=vmem, size = 0x9000, scoped, tag = 'internal scratch']
  %s0 = inlined_call_operand.vmem [shape: bf16[8,16], index: 0, kind: input, shape index: {}]
  %s1 = inlined_call_operand.vmem [shape: bf16[8,4], index: 1, kind: input, shape index: {}]
  %s2 = inlined_call_operand.hbm [shape: bf16[16,32], index: 2, kind: input, shape index: {}]
  %s3 = inlined_call_operand.vmem [shape: bf16[4,32], index: 3, kind: input, shape index: {}]
  %s4 = inlined_call_operand.hbm [shape: f32[1,32], index: 4, kind: input, shape index: {}]
  %s5 = inlined_call_operand.hbm [shape: f32[1,32], index: 5, kind: input, shape index: {}]
  %s6 = inlined_call_operand.vmem [shape: f32[1,32], index: 6, kind: input, shape index: {}]
  %s7 = inlined_call_operand.vmem [shape: bf16[32,32], index: 7, kind: input, shape index: {}]
  %s8 = inlined_call_operand.vmem [shape: bf16[4,32], index: 8, kind: input, shape index: {}]
  %s9 = inlined_call_operand.vmem [shape: f32[1,32], index: 9, kind: input, shape index: {}]
  %s10 = inlined_call_operand.vmem [shape: f32[1,32], index: 10, kind: input, shape index: {}]
  %s11 = inlined_call_operand.vmem [shape: f32[1,32], index: 11, kind: input, shape index: {}]
  %s12 = inlined_call_operand.vmem [shape: bf16[32,8], index: 12, kind: input, shape index: {}]
  %s13 = inlined_call_operand.vmem [shape: bf16[4,8], index: 13, kind: input, shape index: {}]
  %s14 = inlined_call_operand.vmem [shape: f32[1,8], index: 14, kind: input, shape index: {}]
  %s15 = inlined_call_operand.hbm [shape: f32[8,8], index: 15, kind: output, shape index: {}]
  %s16 = sld [smem:[#allocation0]]
  $region82: #{tpu_custom_call.1} parent=0
    _
  %s18 = ssub.s32 1, %s16
  %s19 = scalar_select 0, %s18, %s16
  $region1: #{tpu_custom_call.1} parent=0
    #allocation2 [shape = 'u8[4096]{0}', space=vmem, size = 0x1000, scoped, tag = 'input window, operand 2, single buffered']
    #allocation3 [shape = 's32[1]{0}', space=sflag, size = 0x4, scoped, tag = 'scoped memory for tpu_custom_call.1']
    #allocation4 [shape = 's32[1]{0}', space=sflag, size = 0x4, scoped, tag = 'scoped memory for tpu_custom_call.1']
    #allocation5 [shape = 'u8[512]{0}', space=vmem, size = 0x400, scoped, tag = 'input window, operand 4, single buffered']
    #allocation6 [shape = 's32[1]{0}', space=sflag, size = 0x4, scoped, tag = 'scoped memory for tpu_custom_call.1']
    #allocation7 [shape = 'u8[512]{0}', space=vmem, size = 0x400, scoped, tag = 'input window, operand 5, single buffered']
    #allocation8 [shape = 'u8[4096]{0}', space=vmem, size = 0x1000, scoped, tag = 'output window, operand 0, single buffered']
    %20 = vsyncpa [#allocation3], 0
    %21 = vsyncpa [#allocation6], 0
    %22 = vsyncpa [#allocation4], 0
    // Predicated region
    $region2: #{tpu_custom_call.1} parent=1 // pred_check
      _
    $region3: #{tpu_custom_call.1} parent=1 // pred_check_branch
      %24 = sbr.rel (0) target = $region5
    $region4: #{tpu_custom_call.1} parent=1 // pred_region
      _
    $region5: #{tpu_custom_call.1} parent=1 // pred_fallthru
      _
    // Predicated region
    $region6: #{tpu_custom_call.1} parent=1 // pred_check
      _
    $region7: #{tpu_custom_call.1} parent=1 // pred_check_branch
      %26 = sbr.rel (0) target = $region9
    $region8: #{tpu_custom_call.1} parent=1 // pred_region
      _
    $region9: #{tpu_custom_call.1} parent=1 // pred_fallthru
      _
    // Predicated region
    $region10: #{tpu_custom_call.1} parent=1 // pred_check
      _
    $region11: #{tpu_custom_call.1} parent=1 // pred_check_branch
      %28 = sbr.rel (0) target = $region13
    $region12: #{tpu_custom_call.1} parent=1 // pred_region
      %30 = vsyncadd [#allocation3], 0
      %s31 = sshll.u32 %s2, 4
      %s32 = int_to_ptr.hbm [resolvable:$true] %s31
      %s33 = sshll.u32 [#allocation2], 4
      %s34 = int_to_ptr.vmem [resolvable:$true] %s33
      %39 = dma.hbm_to_vmem [thread:$0]  %s32, 128, %s34, [#allocation3], 64, 64, 4
    $region13: #{tpu_custom_call.1} parent=1 // pred_fallthru
      _
    // Predicated region
    $region14: #{tpu_custom_call.1} parent=1 // pred_check
      _
    $region15: #{tpu_custom_call.1} parent=1 // pred_check_branch
      %41 = sbr.rel (0) target = $region17
    $region16: #{tpu_custom_call.1} parent=1 // pred_region
      _
    $region17: #{tpu_custom_call.1} parent=1 // pred_fallthru
      _
    // Predicated region
    $region18: #{tpu_custom_call.1} parent=1 // pred_check
      _
    $region19: #{tpu_custom_call.1} parent=1 // pred_check_branch
      %43 = sbr.rel (0) target = $region21
    $region20: #{tpu_custom_call.1} parent=1 // pred_region
      %45 = vsyncadd [#allocation6], 0
      %s47 = sshll.u32 %s4, 4
      %s48 = int_to_ptr.hbm [resolvable:$true] %s47
      %s49 = sshll.u32 [#allocation5], 4
      %s50 = int_to_ptr.vmem [resolvable:$true] %s49
      %52 = dma.hbm_to_vmem [thread:$0]  %s48, 16, %s50, [#allocation6]
    $region21: #{tpu_custom_call.1} parent=1 // pred_fallthru
      _
    // Predicated region
    $region22: #{tpu_custom_call.1} parent=1 // pred_check
      _
    $region23: #{tpu_custom_call.1} parent=1 // pred_check_branch
      %54 = sbr.rel (0) target = $region25
    $region24: #{tpu_custom_call.1} parent=1 // pred_region
      %56 = vsyncadd [#allocation6], 0
      %s58 = sshll.u32 %s5, 4
      %s59 = int_to_ptr.hbm [resolvable:$true] %s58
      %s60 = sshll.u32 [#allocation7], 4
      %s61 = int_to_ptr.vmem [resolvable:$true] %s60
      %63 = dma.hbm_to_vmem [thread:$0]  %s59, 16, %s61, [#allocation6]
    $region25: #{tpu_custom_call.1} parent=1 // pred_fallthru
      _
    // Predicated region
    $region26: #{tpu_custom_call.1} parent=1 // pred_check
      _
    $region27: #{tpu_custom_call.1} parent=1 // pred_check_branch
      %65 = sbr.rel (0) target = $region29
    $region28: #{tpu_custom_call.1} parent=1 // pred_region
      _
    $region29: #{tpu_custom_call.1} parent=1 // pred_fallthru
      _
    // Predicated region
    $region30: #{tpu_custom_call.1} parent=1 // pred_check
      _
    $region31: #{tpu_custom_call.1} parent=1 // pred_check_branch
      %67 = sbr.rel (0) target = $region33
    $region32: #{tpu_custom_call.1} parent=1 // pred_region
      _
    $region33: #{tpu_custom_call.1} parent=1 // pred_fallthru
      _
    // Predicated region
    $region34: #{tpu_custom_call.1} parent=1 // pred_check
      _
    $region35: #{tpu_custom_call.1} parent=1 // pred_check_branch
      %69 = sbr.rel (0) target = $region37
    $region36: #{tpu_custom_call.1} parent=1 // pred_region
      _
    $region37: #{tpu_custom_call.1} parent=1 // pred_fallthru
      _
    // Predicated region
    $region38: #{tpu_custom_call.1} parent=1 // pred_check
      _
    $region39: #{tpu_custom_call.1} parent=1 // pred_check_branch
      %71 = sbr.rel (0) target = $region41
    $region40: #{tpu_custom_call.1} parent=1 // pred_region
      _
    $region41: #{tpu_custom_call.1} parent=1 // pred_fallthru
      _
    // Predicated region
    $region42: #{tpu_custom_call.1} parent=1 // pred_check
      _
    $region43: #{tpu_custom_call.1} parent=1 // pred_check_branch
      %73 = sbr.rel (0) target = $region45
    $region44: #{tpu_custom_call.1} parent=1 // pred_region
      _
    $region45: #{tpu_custom_call.1} parent=1 // pred_fallthru
      _
    // Predicated region
    $region46: #{tpu_custom_call.1} parent=1 // pred_check
      _
    $region47: #{tpu_custom_call.1} parent=1 // pred_check_branch
      %75 = sbr.rel (0) target = $region49
    $region48: #{tpu_custom_call.1} parent=1 // pred_region
      _
    $region49: #{tpu_custom_call.1} parent=1 // pred_fallthru
      _
    // Predicated region
    $region50: #{tpu_custom_call.1} parent=1 // pred_check
      _
    $region51: #{tpu_custom_call.1} parent=1 // pred_check_branch
      %77 = sbr.rel (0) target = $region53
    $region52: #{tpu_custom_call.1} parent=1 // pred_region
      _
    $region53: #{tpu_custom_call.1} parent=1 // pred_fallthru
      _
    // Predicated region
    $region54: #{tpu_custom_call.1} parent=1 // pred_check
      _
    $region55: #{tpu_custom_call.1} parent=1 // pred_check_branch
      %79 = sbr.rel (0) target = $region57
    $region56: #{tpu_custom_call.1} parent=1 // pred_region
      _
    $region57: #{tpu_custom_call.1} parent=1 // pred_fallthru
      _
    // Predicated region
    $region58: #{tpu_custom_call.1} parent=1 // pred_check
      _
    $region59: #{tpu_custom_call.1} parent=1 // pred_check_branch
      %81 = sbr.rel (0) target = $region61
    $region60: #{tpu_custom_call.1} parent=1 // pred_region
      _
    $region61: #{tpu_custom_call.1} parent=1 // pred_fallthru
      _
    // Predicated region
    $region62: #{tpu_custom_call.1} parent=1 // pred_check
      _
    $region63: #{tpu_custom_call.1} parent=1 // pred_check_branch
      %83 = sbr.rel (0) target = $region65
    $region64: #{tpu_custom_call.1} parent=1 // pred_region
      %85 = dma.done [#allocation3], 128
    $region65: #{tpu_custom_call.1} parent=1 // pred_fallthru
      _
    // Predicated region
    $region66: #{tpu_custom_call.1} parent=1 // pred_check
      _
    $region67: #{tpu_custom_call.1} parent=1 // pred_check_branch
      %87 = sbr.rel (0) target = $region69
    $region68: #{tpu_custom_call.1} parent=1 // pred_region
      %89 = dma.done [#allocation6], 16
    $region69: #{tpu_custom_call.1} parent=1 // pred_fallthru
      _
    // Predicated region
    $region70: #{tpu_custom_call.1} parent=1 // pred_check
      _
    $region71: #{tpu_custom_call.1} parent=1 // pred_check_branch
      %91 = sbr.rel (0) target = $region73
    $region72: #{tpu_custom_call.1} parent=1 // pred_region
      %93 = dma.done [#allocation6], 16
    $region73: #{tpu_custom_call.1} parent=1 // pred_fallthru
      _
    %v95 = vld [vmem:[%s0] sm:$0xf]
    %v96 = vld [vmem:[%s1] sm:$0xf]
    %v97 = vld [vmem:[#allocation2] sm:$0xf]
    %v98 = vld [vmem:[#allocation2 + $0x4] sm:$0xf]
    %v99 = vld [vmem:[%s3] sm:$0x3]
    %v100 = vld [vmem:[#allocation5] sm:$0x1]
    %vm101 = vcmask 31744
    %v103 = vsel %vm101, %v96, 0
    %vm105 = vcmask 1041408
    %v107 = vsel %vm105, %v99, 0
    %109 = vmatpush.bf16.msra.mxu0 0
    %110 = vmatpush.bf16.msra.mxu0 0
    %111 = vmatpush.bf16.msra.mxu0 0
    %112 = vmatpush.bf16.msra.mxu0 0
    %113 = vmatpush.bf16.msra.mxu0 0
    %114 = vmatpush.bf16.msra.mxu0 0
    %115 = vmatpush.bf16.msra.mxu0 0
    %116 = vmatpush.bf16.msra.mxu0 %v107
    %117 = vmatmul.bf16.gmra.mxu0 %v103
    %v118 = vpop.f32.mrf.mxu0
    %v119 = vadd.f32 0.0, %v118
    %v120 = vpop.f32.mrf.mxu0
    %121 = vdwg.mxu0
    %v124 = vunpack.c.l.b16 %v97
    %v125 = vunpack.c.l.b16 %v98
    %v126 = vpack.c.b16 %v125, %v124
    %vm128 = vcmask 130048
    %v130 = vsel %vm128, %v95, 0
    %132 = vmatpush.bf16.msra.mxu0 0
    %133 = vmatpush.bf16.msra.mxu0 0
    %134 = vmatpush.bf16.msra.mxu0 0
    %135 = vmatpush.bf16.msra.mxu0 0
    %136 = vmatpush.bf16.msra.mxu0 0
    %137 = vmatpush.bf16.msra.mxu0 0
    %138 = vmatpush.bf16.msra.mxu0 0
    %139 = vmatpush.bf16.msra.mxu0 %v126
    %140 = vmatmul.bf16.gmra.mxu0 %v130
    %v141 = vpop.f32.mrf.mxu0
    %v142 = vadd.f32 %v119, %v141
    %v143 = vpop.f32.mrf.mxu0
    %144 = vdwg.mxu0
    %v146 = vperm.slane %v100, 0
    %v148 = vadd.f32 %v142, %v146
    %v149 = vld [vmem:[#allocation7] sm:$0x1]
    %v150 = vld [vmem:[%s6] sm:$0x1]
    %vm151 = vcmask 261120
    %v152 = vsel %vm151, %v148, 0.0
    %153 = vadd.xlane.f32.xlu0 %v152
    %v154 = vpop.xlane.xlu0 %153
    %v155 = vmul.f32 %v154, 0.03125
    %v156 = vsub.f32 %v148, %v155
    %v157 = vmul.f32 %v156, %v156
    %v158 = vsel %vm151, %v157, 0.0
    %159 = vadd.xlane.f32.xlu0 %v158
    %v160 = vpop.xlane.xlu0 %159
    %v161 = vmul.f32 %v160, 0.03125
    %v162 = vadd.f32 %v161, 1e-06
    %v163 = vrsqrt.pop %v162
    %v164 = vmul.f32 %v163, %v162
    %v165 = vmul.f32 %v164, %v163
    %v166 = vmul.f32 0.5, %v165
    %v167 = vsub.f32 1.5, %v166
    %v168 = vmul.f32 %v163, %v167
    %vm169 = vweird.f32 %v162
    %vm170 = vweird.f32 %v163
    %vm171 = vmor %vm169, %vm170
    %v172 = vsel %vm171, %v163, %v168
    %v174 = vperm.slane %v149, 0
    %v176 = vmul.f32 %v174, %v172
    %v177 = vmul.f32 %v156, %v176
    %v179 = vperm.slane %v150, 0
    %v181 = vadd.f32 %v177, %v179
    %v182 = vmul.f32 %v181, 0.5
    %v183 = vmul.f32 %v181, 0.044715
    %v184 = vmul.f32 %v183, %v181
    %v185 = vmul.f32 %v184, %v181
    %v186 = vadd.f32 %v181, %v185
    %v187 = vmul.f32 %v186, 0.7978846
    %v188 = vtanh.pop %v187
    %v189 = vadd.f32 %v188, 1.0
    %v190 = vmul.f32 %v182, %v189
    %v191 = vpack.c.bf16 %v190, %v190
    %v192 = vld [vmem:[%s7] sm:$0xf]
    %v193 = vld [vmem:[%s7 + $0x4] sm:$0xf]
    %v194 = vld [vmem:[%s7 + $0x8] sm:$0xf]
    %v195 = vld [vmem:[%s7 + $0xc] sm:$0xf]
    %v196 = vld [vmem:[%s8] sm:$0x3]
    %v197 = vld [vmem:[%s9] sm:$0x1]
    %v199 = vsel %vm105, %v196, 0
    %201 = vmatpush.bf16.msra.mxu0 0
    %202 = vmatpush.bf16.msra.mxu0 0
    %203 = vmatpush.bf16.msra.mxu0 0
    %204 = vmatpush.bf16.msra.mxu0 0
    %205 = vmatpush.bf16.msra.mxu0 0
    %206 = vmatpush.bf16.msra.mxu0 0
    %207 = vmatpush.bf16.msra.mxu0 0
    %208 = vmatpush.bf16.msra.mxu0 %v199
    %209 = vmatmul.bf16.gmra.mxu0 %v103
    %v210 = vpop.f32.mrf.mxu0
    %v211 = vadd.f32 0.0, %v210
    %v212 = vpop.f32.mrf.mxu0
    %213 = vdwg.mxu0
    %v218 = vunpack.c.l.b16 %v192
    %v219 = vunpack.c.l.b16 %v193
    %v220 = vunpack.c.l.b16 %v194
    %v221 = vunpack.c.l.b16 %v195
    %v222 = vpack.c.b16 %v219, %v218
    %v223 = vpack.c.b16 %v221, %v220
    %v227 = vsel %vm151, %v191, 0
    %229 = vmatpush.bf16.msra.mxu0 0
    %230 = vmatpush.bf16.msra.mxu0 0
    %231 = vmatpush.bf16.msra.mxu0 0
    %232 = vmatpush.bf16.msra.mxu0 0
    %233 = vmatpush.bf16.msra.mxu0 0
    %234 = vmatpush.bf16.msra.mxu0 0
    %235 = vmatpush.bf16.msra.mxu0 %v223
    %236 = vmatpush.bf16.msra.mxu0 %v222
    %237 = vmatmul.bf16.gmra.mxu0 %v227
    %v238 = vpop.f32.mrf.mxu0
    %v239 = vadd.f32 %v211, %v238
    %v240 = vpop.f32.mrf.mxu0
    %241 = vdwg.mxu0
    %v243 = vperm.slane %v197, 0
    %v245 = vadd.f32 %v239, %v243
    %v246 = vld [vmem:[%s10] sm:$0x1]
    %v247 = vld [vmem:[%s11] sm:$0x1]
    %v248 = vsel %vm151, %v245, 0.0
    %249 = vadd.xlane.f32.xlu0 %v248
    %v250 = vpop.xlane.xlu0 %249
    %v251 = vmul.f32 %v250, 0.03125
    %v252 = vsub.f32 %v245, %v251
    %v253 = vmul.f32 %v252, %v252
    %v254 = vsel %vm151, %v253, 0.0
    %255 = vadd.xlane.f32.xlu0 %v254
    %v256 = vpop.xlane.xlu0 %255
    %v257 = vmul.f32 %v256, 0.03125
    %v258 = vadd.f32 %v257, 1e-06
    %v259 = vrsqrt.pop %v258
    %v260 = vmul.f32 %v259, %v258
    %v261 = vmul.f32 %v260, %v259
    %v262 = vmul.f32 0.5, %v261
    %v263 = vsub.f32 1.5, %v262
    %v264 = vmul.f32 %v259, %v263
    %vm265 = vweird.f32 %v258
    %vm266 = vweird.f32 %v259
    %vm267 = vmor %vm265, %vm266
    %v268 = vsel %vm267, %v259, %v264
    %v270 = vperm.slane %v246, 0
    %v272 = vmul.f32 %v270, %v268
    %v273 = vmul.f32 %v252, %v272
    %v275 = vperm.slane %v247, 0
    %v277 = vadd.f32 %v273, %v275
    %v278 = vmul.f32 %v277, 0.5
    %v279 = vmul.f32 %v277, 0.044715
    %v280 = vmul.f32 %v279, %v277
    %v281 = vmul.f32 %v280, %v277
    %v282 = vadd.f32 %v277, %v281
    %v283 = vmul.f32 %v282, 0.7978846
    %v284 = vtanh.pop %v283
    %v285 = vadd.f32 %v284, 1.0
    %v286 = vmul.f32 %v278, %v285
    %v287 = vpack.c.bf16 %v286, %v286
    %v288 = vld [vmem:[%s12] sm:$0xf]
    %v289 = vld [vmem:[%s12 + $0x4] sm:$0xf]
    %v290 = vld [vmem:[%s12 + $0x8] sm:$0xf]
    %v291 = vld [vmem:[%s12 + $0xc] sm:$0xf]
    %v292 = vld [vmem:[%s13] sm:$0x3]
    %v293 = vld [vmem:[%s14] sm:$0x1]
    %v295 = vsel %vm105, %v292, 0
    %297 = vmatpush.bf16.msra.mxu0 0
    %298 = vmatpush.bf16.msra.mxu0 0
    %299 = vmatpush.bf16.msra.mxu0 0
    %300 = vmatpush.bf16.msra.mxu0 0
    %301 = vmatpush.bf16.msra.mxu0 0
    %302 = vmatpush.bf16.msra.mxu0 0
    %303 = vmatpush.bf16.msra.mxu0 0
    %304 = vmatpush.bf16.msra.mxu0 %v295
    %305 = vmatmul.bf16.gmra.mxu0 %v103
    %v306 = vpop.f32.mrf.mxu0
    %v307 = vadd.f32 0.0, %v306
    %v308 = vpop.f32.mrf.mxu0
    %309 = vdwg.mxu0
    %v314 = vunpack.c.l.b16 %v288
    %v315 = vunpack.c.l.b16 %v289
    %v316 = vunpack.c.l.b16 %v290
    %v317 = vunpack.c.l.b16 %v291
    %v318 = vpack.c.b16 %v315, %v314
    %v319 = vpack.c.b16 %v317, %v316
    %v323 = vsel %vm151, %v287, 0
    %325 = vmatpush.bf16.msra.mxu0 0
    %326 = vmatpush.bf16.msra.mxu0 0
    %327 = vmatpush.bf16.msra.mxu0 0
    %328 = vmatpush.bf16.msra.mxu0 0
    %329 = vmatpush.bf16.msra.mxu0 0
    %330 = vmatpush.bf16.msra.mxu0 0
    %331 = vmatpush.bf16.msra.mxu0 %v319
    %332 = vmatpush.bf16.msra.mxu0 %v318
    %333 = vmatmul.bf16.gmra.mxu0 %v323
    %v334 = vpop.f32.mrf.mxu0
    %v335 = vadd.f32 %v307, %v334
    %v336 = vpop.f32.mrf.mxu0
    %337 = vdwg.mxu0
    %v339 = vperm.slane %v293, 0
    %v341 = vadd.f32 %v335, %v339
    %vm342 = vcmask 64512
    %343 = vst.msk [vmem:[#allocation8] sm:$0xff] %vm342, %v341
    // Predicated region
    $region74: #{tpu_custom_call.1} parent=1 // pred_check
      _
    $region75: #{tpu_custom_call.1} parent=1 // pred_check_branch
      %345 = sbr.rel (0) target = $region77
    $region76: #{tpu_custom_call.1} parent=1 // pred_region
      %347 = vsyncadd [#allocation4], 0
      %s349 = sshll.u32 [#allocation8], 4
      %s350 = int_to_ptr.vmem [resolvable:$true] %s349
      %s351 = sshll.u32 %s15, 4
      %s352 = int_to_ptr.hbm [resolvable:$true] %s351
      %354 = dma.vmem_to_hbm [thread:$0]  %s350, 128, %s352, [#allocation4]
    $region77: #{tpu_custom_call.1} parent=1 // pred_fallthru
      _
    // Predicated region
    $region78: #{tpu_custom_call.1} parent=1 // pred_check
      _
    $region79: #{tpu_custom_call.1} parent=1 // pred_check_branch
      %356 = sbr.rel (0) target = $region81
    $region80: #{tpu_custom_call.1} parent=1 // pred_region
      %358 = dma.done [#allocation4], 128
    $region81: #{tpu_custom_call.1} parent=1 // pred_fallthru
      _
    %359 = vsyncpa [#allocation3], 1
    %360 = vsyncpa [#allocation6], 1
    %361 = vsyncpa [#allocation4], 1

</llo_original>
